<compile_context>
chip_gen: v7x
topology: tpu7x:2x2x1
jax: 0.10.0
libtpu: 0.0.40
codegen_flags: <defaults>
</compile_context>

<pallas_src>
import functools

import jax
import jax.numpy as jnp
from jax.experimental import pallas as pl
from jax.experimental.pallas import tpu as pltpu


# ----------------------------------------------------------------------------
# Kernel
# ----------------------------------------------------------------------------
def _fused_mlp_kernel(*refs, num_layers, apply_tanh_last, scale):
    """refs = (xT_ref, w0, b0, w1, b1, ..., wL, bL, oT_ref).

    Transposed layout: activations are (features, batch_tile) so the batch is
    on the 128-lane axis.  Weights are (out_features, in_features) = native
    PyTorch layout.  All tiles live in VMEM; intermediates never touch HBM;
    the layer loop is a static Python unroll (num_layers is a Python int).
    """
    xT_ref = refs[0]
    oT_ref = refs[-1]
    params = refs[1:-1]

    h = xT_ref[...]                                    # (K0, tm) f32
    for i in range(num_layers):
        w_ref = params[2 * i]                          # (fo, fi)  bf16
        b_ref = params[2 * i + 1]                      # (fo, 1)   f32
        # MXU matmul: bf16 operands, f32 accumulation.
        y = jnp.dot(w_ref[...], h.astype(w_ref.dtype),
                    preferred_element_type=jnp.float32)    # (fo, tm) f32
        y = y + b_ref[...]                             # lane-broadcast bias
        if i < num_layers - 1:
            h = jnp.tanh(y)                            # hidden activation (EUP)
        else:
            if apply_tanh_last:                        # static Python branch
                y = jnp.tanh(y)
            if scale != 1.0:                           # static Python scalar
                y = y * scale
            h = y
    oT_ref[...] = h.astype(oT_ref.dtype)               # lane-dense, unmasked store


# ----------------------------------------------------------------------------
# Sizing helpers
# ----------------------------------------------------------------------------
def _vmem_budget_bytes(frac=0.8):
    """Generation-aware VMEM request: ~frac * physical capacity (~51 MiB on
    v7x's 64 MiB, ~102 MiB on v5e/v6e's 128 MiB), leaving headroom for
    compiler-internal scratch.  Conservative fallback if the query fails."""
    cap = None
    try:
        cap = getattr(pltpu.get_tpu_info(), "vmem_capacity_bytes", None)
    except Exception:
        cap = None
    if not cap:
        cap = 64 << 20
    return int(cap * frac)


def _pick_tile_m(m, layer_sizes, vmem_budget):
    """Batch-tile size (batch is the LANE axis).

    Small batches use a single full-extent tile; otherwise pick the largest
    multiple of 128 that (a) fits a VMEM budget, (b) is <= 8192, and
    (c) leaves at least 2 grid steps so both v7x TensorCores get work."""
    if m <= 256:
        return m
    k0, n_out, wmax = layer_sizes[0], layer_sizes[-1], max(layer_sizes)
    # Tile-proportional f32 bytes per batch column:
    #   double-buffered xT/outT tiles + live intermediates (+ slack).
    bytes_per_col = 4 * (2 * (k0 + n_out) + 4 * wmax)
    cap_by_vmem = max(128, (vmem_budget // 2) // bytes_per_col)
    tm = min(8192, cap_by_vmem, -(-m // 2))     # >=2 "parallel" tiles for v7x
    tm = ((tm + 127) // 128) * 128              # lane-dense multiple of 128
    return tm


def _vmem_limit_bytes(tm, layer_sizes, w_itemsize, budget):
    """Derive the VMEM request from actual buffer sizes (no double counting),
    clamped to the generation-aware budget."""
    k0, n_out, wmax = layer_sizes[0], layer_sizes[-1], max(layer_sizes)
    param_b = sum(fo * fi * w_itemsize + fo * 4
                  for fi, fo in zip(layer_sizes[:-1], layer_sizes[1:]))
    param_b *= 2                                   # grid-invariant, but dbl-buffered
    io_b = 2 * tm * (k0 + n_out) * 4               # double-buffered xT / outT tiles
    act_b = 4 * tm * wmax * 4                      # live intermediates + slack
    need = param_b + io_b + act_b + (2 << 20)      # + compiler scratch headroom
    return int(min(max(need, 4 << 20), budget))


# ----------------------------------------------------------------------------
# Params / forward
# ----------------------------------------------------------------------------
def init_mlp_params(key, layer_sizes, *, weight_dtype=jnp.bfloat16):
    """Deterministic synthetic init matching nn.Linear (zero biases).

    Weights stay in native PyTorch (out_features, in_features) layout — the
    transposed-compute kernel consumes them directly, so there is no transpose
    at init or per forward.  Weights are stored bf16 (MXU-native); biases f32.
    """
    params = []
    for fan_in, fan_out in zip(layer_sizes[:-1], layer_sizes[1:]):
        key, wk = jax.random.split(key)
        bound = 1.0 / (fan_in ** 0.5)
        w = jax.random.uniform(wk, (fan_out, fan_in), jnp.float32, -bound, bound)
        params.append((w.astype(weight_dtype), jnp.zeros((fan_out,), jnp.float32)))
    return params


def _resolve_output_activation(output_activation):
    if output_activation is None:
        return False
    if output_activation == "tanh" or output_activation is jnp.tanh:
        return True
    # TODO(synk): arbitrary Python-callable output activations are not
    # supported inside the fused kernel; raise rather than silently ignore.
    raise NotImplementedError(
        "fused Pallas MLP supports output_activation in {None, 'tanh', jnp.tanh}; "
        f"got {output_activation!r}")


def _xla_fast_forward(params, x, apply_tanh_last, scale):
    """Small-batch fast path: plain fused XLA dot chain (same numerics)."""
    h = x.astype(jnp.float32)
    n = len(params)
    for i, (w, b) in enumerate(params):
        y = jax.lax.dot_general(
            h.astype(w.dtype), w,
            dimension_numbers=(((1,), (1,)), ((), ())),
            preferred_element_type=jnp.float32)            # (M, fo)
        y = y + b.astype(jnp.float32)[None, :]
        if i < n - 1:
            h = jnp.tanh(y)
        else:
            if apply_tanh_last:
                y = jnp.tanh(y)
            h = y * scale
    return h


def mlp_forward(params, x, *, output_activation=None, output_scale=1,
                output_squeeze=False, min_pallas_batch=128):
    """Mirrors MLP.forward: tanh on hidden layers, optional output activation,
    output scale, optional squeeze.  Whole MLP runs in one pallas_call."""
    apply_tanh_last = _resolve_output_activation(output_activation)
    scale = float(output_scale)   # static; raises early if a traced scalar sneaks in

    squeeze_batch = x.ndim == 1
    if squeeze_batch:
        x = x[None, :]

    M, K0 = x.shape
    num_layers = len(params)
    assert params[0][0].shape[1] == K0, "input width mismatch"
    layer_sizes = [K0] + [w.shape[0] for (w, _) in params]   # (out, in) layout
    n_out = layer_sizes[-1]

    if M < min_pallas_batch:
        # Launch + DMA setup would dominate a few-KFLOP problem.
        out = _xla_fast_forward(params, x, apply_tanh_last, scale)
    else:
        vmem_budget = _vmem_budget_bytes()
        tm = _pick_tile_m(M, layer_sizes, vmem_budget)
        grid = (pl.cdiv(M, tm),)          # padded last tile OK: only batch is tiled

        xT = x.astype(jnp.float32).T      # (K0, M): one transpose per call

        in_specs = [pl.BlockSpec((K0, tm), lambda i: (0, i))]
        flat_inputs = [xT]
        for (w, b) in params:
            fo, fi = w.shape
            # Grid-invariant parameter blocks (constant index_map).  They are
            # still double-buffered by default; single-buffering (pl.Buffered(1))
            # would halve that footprint but is negligible at these widths.
            in_specs.append(pl.BlockSpec((fo, fi), lambda i: (0, 0)))   # weight
            in_specs.append(pl.BlockSpec((fo, 1), lambda i: (0, 0)))    # bias
            flat_inputs.append(w)
            flat_inputs.append(b.astype(jnp.float32).reshape(fo, 1))
        out_specs = pl.BlockSpec((n_out, tm), lambda i: (0, i))

        kernel = functools.partial(
            _fused_mlp_kernel,
            num_layers=num_layers,
            apply_tanh_last=apply_tanh_last,
            scale=scale,
        )
        w_itemsize = max(int(w.dtype.itemsize) for (w, _) in params)

        outT = pl.pallas_call(
            kernel,
            out_shape=jax.ShapeDtypeStruct((n_out, M), jnp.float32),
            grid_spec=pltpu.PrefetchScalarGridSpec(
                num_scalar_prefetch=0,
                grid=grid,
                in_specs=in_specs,
                out_specs=out_specs,
            ),
            compiler_params=pltpu.CompilerParams(
                dimension_semantics=("parallel",),   # batch tiles across v7x's 2 TCs
                vmem_limit_bytes=_vmem_limit_bytes(
                    tm, layer_sizes, w_itemsize, vmem_budget),
            ),
        )(*flat_inputs)
        out = outT.T                                  # back to (M, n_out)

    if squeeze_batch:
        out = out[0]
    if output_squeeze:
        out = jnp.squeeze(out)
    return out


def mlp_reference(params, x, *, output_activation=None, output_scale=1,
                  output_squeeze=False):
    """Pure-JAX f32 reference mirroring MLP.forward (weights upcast to f32)."""
    h = x.astype(jnp.float32)
    n = len(params)
    for i, (w, b) in enumerate(params):
        y = h @ w.astype(jnp.float32).T + b.astype(jnp.float32)
        if i < n - 1:
            h = jnp.tanh(y)
        else:
            if output_activation == "tanh":
                y = jnp.tanh(y)
            h = y * output_scale
    if output_squeeze:
        h = jnp.squeeze(h)
    return h


if __name__ == "__main__":
    key = jax.random.PRNGKey(0)
    key, xk = jax.random.split(key)

    # MLP(layers=[16, 32, 32, 8], activation=tanh, output_activation=None,
    #     output_scale=1, output_squeeze=False)
    layer_sizes = [16, 32, 32, 8]
    batch = 2

    params = init_mlp_params(key, layer_sizes)
    x = jax.random.normal(xk, (batch, layer_sizes[0]), jnp.float32)

    # Small batch: force the Pallas path so the kernel itself is exercised.
    out = jax.block_until_ready(mlp_forward(params, x, min_pallas_batch=1))
    ref = mlp_reference(params, x)
    assert out.shape == (batch, layer_sizes[-1])
    assert jnp.allclose(out, ref, atol=2e-2, rtol=2e-2)   # bf16-operand tolerance

    # Default small-batch fast path (pure XLA) must agree too.
    out_fast = jax.block_until_ready(mlp_forward(params, x))
    assert jnp.allclose(out_fast, ref, atol=2e-2, rtol=2e-2)

    # Larger, non-divisible batch: lane-dense tiled path with >=2 "parallel"
    # tiles (padded last tile) plus tanh output activation + scale epilogue.
    key, xk2 = jax.random.split(key)
    big_m = 1000   # deliberately not a multiple of 128
    xb = jax.random.normal(xk2, (big_m, layer_sizes[0]), jnp.float32)
    outb = jax.block_until_ready(
        mlp_forward(params, xb, output_activation="tanh", output_scale=2.0))
    refb = mlp_reference(params, xb, output_activation="tanh", output_scale=2.0)
    assert outb.shape == (big_m, layer_sizes[-1])
    assert jnp.allclose(outb, refb, atol=2e-2, rtol=2e-2)

    print("KERNEL_OK")
</pallas_src>

<mosaic_0001>
module attributes {stable_mosaic.version = 11 : i64} {
  func.func @_fused_mlp_kernel(%arg0: i32, %arg1: memref<16x2xf32, #tpu.memory_space<vmem>>, %arg2: memref<32x16xbf16, #tpu.memory_space<vmem>>, %arg3: memref<32x1xf32, #tpu.memory_space<vmem>>, %arg4: memref<32x32xbf16, #tpu.memory_space<vmem>>, %arg5: memref<32x1xf32, #tpu.memory_space<vmem>>, %arg6: memref<8x32xbf16, #tpu.memory_space<vmem>>, %arg7: memref<8x1xf32, #tpu.memory_space<vmem>>, %arg8: memref<8x2xf32, #tpu.memory_space<vmem>>) attributes {dimension_semantics = [#tpu.dimension_semantics<parallel>], iteration_bounds = array<i64: 1>, scalar_prefetch = 0 : i64, scratch_operands = 0 : i64, tpu.core_type = #tpu.core_type<tc>, window_params = [{transform_indices = @transform_0, window_bounds = array<i64: 16, 2>}, {pipeline_mode = #tpu.pipeline_mode<synchronous>, transform_indices = @transform_1, window_bounds = array<i64: 32, 16>}, {pipeline_mode = #tpu.pipeline_mode<synchronous>, transform_indices = @transform_2, window_bounds = array<i64: 32, 1>}, {pipeline_mode = #tpu.pipeline_mode<synchronous>, transform_indices = @transform_3, window_bounds = array<i64: 32, 32>}, {pipeline_mode = #tpu.pipeline_mode<synchronous>, transform_indices = @transform_4, window_bounds = array<i64: 32, 1>}, {pipeline_mode = #tpu.pipeline_mode<synchronous>, transform_indices = @transform_5, window_bounds = array<i64: 8, 32>}, {pipeline_mode = #tpu.pipeline_mode<synchronous>, transform_indices = @transform_6, window_bounds = array<i64: 8, 1>}, {transform_indices = @transform_7, window_bounds = array<i64: 8, 2>}]} {
    %c0 = arith.constant 0 : index
    %c0_0 = arith.constant 0 : index
    %0 = vector.load %arg1[%c0, %c0_0] : memref<16x2xf32, #tpu.memory_space<vmem>>, vector<16x2xf32>
    %c0_1 = arith.constant 0 : index
    %c0_2 = arith.constant 0 : index
    %1 = vector.load %arg2[%c0_1, %c0_2] : memref<32x16xbf16, #tpu.memory_space<vmem>>, vector<32x16xbf16>
    %2 = arith.truncf %0 : vector<16x2xf32> to vector<16x2xbf16>
    %cst = arith.constant dense<0.000000e+00> : vector<32x2xf32>
    %3 = tpu.matmul %1, %2, %cst {dimension_numbers = #tpu.dot_dimension_numbers<[1], [0], [0], [1], [0, 0, 1, 1], [], []>} : vector<32x16xbf16>, vector<16x2xbf16>, vector<32x2xf32> -> vector<32x2xf32>
    %c0_3 = arith.constant 0 : index
    %c0_4 = arith.constant 0 : index
    %4 = vector.load %arg3[%c0_3, %c0_4] : memref<32x1xf32, #tpu.memory_space<vmem>>, vector<32x1xf32>
    %5 = vector.broadcast %4 : vector<32x1xf32> to vector<32x2xf32>
    %6 = arith.addf %3, %5 : vector<32x2xf32>
    %7 = math.tanh %6 : vector<32x2xf32>
    %c0_5 = arith.constant 0 : index
    %c0_6 = arith.constant 0 : index
    %8 = vector.load %arg4[%c0_5, %c0_6] : memref<32x32xbf16, #tpu.memory_space<vmem>>, vector<32x32xbf16>
    %9 = arith.truncf %7 : vector<32x2xf32> to vector<32x2xbf16>
    %cst_7 = arith.constant dense<0.000000e+00> : vector<32x2xf32>
    %10 = tpu.matmul %8, %9, %cst_7 {dimension_numbers = #tpu.dot_dimension_numbers<[1], [0], [0], [1], [0, 0, 1, 1], [], []>} : vector<32x32xbf16>, vector<32x2xbf16>, vector<32x2xf32> -> vector<32x2xf32>
    %c0_8 = arith.constant 0 : index
    %c0_9 = arith.constant 0 : index
    %11 = vector.load %arg5[%c0_8, %c0_9] : memref<32x1xf32, #tpu.memory_space<vmem>>, vector<32x1xf32>
    %12 = vector.broadcast %11 : vector<32x1xf32> to vector<32x2xf32>
    %13 = arith.addf %10, %12 : vector<32x2xf32>
    %14 = math.tanh %13 : vector<32x2xf32>
    %c0_10 = arith.constant 0 : index
    %c0_11 = arith.constant 0 : index
    %15 = vector.load %arg6[%c0_10, %c0_11] : memref<8x32xbf16, #tpu.memory_space<vmem>>, vector<8x32xbf16>
    %16 = arith.truncf %14 : vector<32x2xf32> to vector<32x2xbf16>
    %cst_12 = arith.constant dense<0.000000e+00> : vector<8x2xf32>
    %17 = tpu.matmul %15, %16, %cst_12 {dimension_numbers = #tpu.dot_dimension_numbers<[1], [0], [0], [1], [0, 0, 1, 1], [], []>} : vector<8x32xbf16>, vector<32x2xbf16>, vector<8x2xf32> -> vector<8x2xf32>
    %c0_13 = arith.constant 0 : index
    %c0_14 = arith.constant 0 : index
    %18 = vector.load %arg7[%c0_13, %c0_14] : memref<8x1xf32, #tpu.memory_space<vmem>>, vector<8x1xf32>
    %19 = vector.broadcast %18 : vector<8x1xf32> to vector<8x2xf32>
    %20 = arith.addf %17, %19 : vector<8x2xf32>
    %c0_15 = arith.constant 0 : index
    %c0_16 = arith.constant 0 : index
    %21 = vector.load %arg8[%c0_15, %c0_16] : memref<8x2xf32, #tpu.memory_space<vmem>>, vector<8x2xf32>
    tpu.vector_store %arg8[%c0_15, %c0_16], %20 {strides = array<i32>} : memref<8x2xf32, #tpu.memory_space<vmem>>, vector<8x2xf32>,
    return
  }
  func.func @transform_0(%arg0: i32) -> (i32, i32) {
    %c0_i32 = arith.constant 0 : i32
    %c0_i32_0 = arith.constant 0 : i32
    return %c0_i32, %arg0 : i32, i32
  }
  func.func @transform_1(%arg0: i32) -> (i32, i32) {
    %c0_i32 = arith.constant 0 : i32
    %c0_i32_0 = arith.constant 0 : i32
    %c0_i32_1 = arith.constant 0 : i32
    return %c0_i32, %c0_i32_0 : i32, i32
  }
  func.func @transform_2(%arg0: i32) -> (i32, i32) {
    %c0_i32 = arith.constant 0 : i32
    %c0_i32_0 = arith.constant 0 : i32
    %c0_i32_1 = arith.constant 0 : i32
    return %c0_i32, %c0_i32_0 : i32, i32
  }
  func.func @transform_3(%arg0: i32) -> (i32, i32) {
    %c0_i32 = arith.constant 0 : i32
    %c0_i32_0 = arith.constant 0 : i32
    %c0_i32_1 = arith.constant 0 : i32
    return %c0_i32, %c0_i32_0 : i32, i32
  }
  func.func @transform_4(%arg0: i32) -> (i32, i32) {
    %c0_i32 = arith.constant 0 : i32
    %c0_i32_0 = arith.constant 0 : i32
    %c0_i32_1 = arith.constant 0 : i32
    return %c0_i32, %c0_i32_0 : i32, i32
  }
  func.func @transform_5(%arg0: i32) -> (i32, i32) {
    %c0_i32 = arith.constant 0 : i32
    %c0_i32_0 = arith.constant 0 : i32
    %c0_i32_1 = arith.constant 0 : i32
    return %c0_i32, %c0_i32_0 : i32, i32
  }
  func.func @transform_6(%arg0: i32) -> (i32, i32) {
    %c0_i32 = arith.constant 0 : i32
    %c0_i32_0 = arith.constant 0 : i32
    %c0_i32_1 = arith.constant 0 : i32
    return %c0_i32, %c0_i32_0 : i32, i32
  }
  func.func @transform_7(%arg0: i32) -> (i32, i32) {
    %c0_i32 = arith.constant 0 : i32
    %c0_i32_0 = arith.constant 0 : i32
    return %c0_i32, %arg0 : i32, i32
  }
}

</mosaic_0001>

<llo_original>
// kernel: tpu_custom_call.1
$region0: #{tpu_custom_call.1}
  #allocation0 [shape = 'u32[]', space=smem, size = 0x4, offset = 0x4, fixed_abs, tag = 'smem constant byte address 0x4 - core index']
  #allocation1 [shape = 'u32[144,128]{1,0:T(1,128)}', space=vmem, size = 0x12000, scoped, tag = 'internal scratch']
  %s0 = inlined_call_operand.vmem [shape: f32[16,2], index: 0, kind: input, shape index: {}]
  %s1 = inlined_call_operand.vmem [shape: bf16[32,16], index: 1, kind: input, shape index: {}]
  %s2 = inlined_call_operand.vmem [shape: f32[32,1], index: 2, kind: input, shape index: {}]
  %s3 = inlined_call_operand.vmem [shape: bf16[32,32], index: 3, kind: input, shape index: {}]
  %s4 = inlined_call_operand.vmem [shape: f32[32,1], index: 4, kind: input, shape index: {}]
  %s5 = inlined_call_operand.vmem [shape: bf16[8,32], index: 5, kind: input, shape index: {}]
  %s6 = inlined_call_operand.vmem [shape: f32[8,1], index: 6, kind: input, shape index: {}]
  %s7 = inlined_call_operand.vmem [shape: f32[8,2], index: 7, kind: output, shape index: {}]
  %s8 = sld [smem:[#allocation0]]
  $region38: #{tpu_custom_call.1} parent=0
    _
  %s10 = ssub.s32 1, %s8
  %s11 = scalar_select 0, %s10, %s8
  // Predicated region
  $region2: #{tpu_custom_call.1} parent=0 // pred_check
    _
  $region3: #{tpu_custom_call.1} parent=0 // pred_check_branch
    %13 = sbr.rel (0) target = $region5
  $region4: #{tpu_custom_call.1} parent=0 // pred_region
    _
  $region5: #{tpu_custom_call.1} parent=0 // pred_fallthru
    _
  // Predicated region
  $region6: #{tpu_custom_call.1} parent=0 // pred_check
    _
  $region7: #{tpu_custom_call.1} parent=0 // pred_check_branch
    %15 = sbr.rel (0) target = $region9
  $region8: #{tpu_custom_call.1} parent=0 // pred_region
    _
  $region9: #{tpu_custom_call.1} parent=0 // pred_fallthru
    _
  // Predicated region
  $region10: #{tpu_custom_call.1} parent=0 // pred_check
    _
  $region11: #{tpu_custom_call.1} parent=0 // pred_check_branch
    %17 = sbr.rel (0) target = $region13
  $region12: #{tpu_custom_call.1} parent=0 // pred_region
    _
  $region13: #{tpu_custom_call.1} parent=0 // pred_fallthru
    _
  // Predicated region
  $region14: #{tpu_custom_call.1} parent=0 // pred_check
    _
  $region15: #{tpu_custom_call.1} parent=0 // pred_check_branch
    %19 = sbr.rel (0) target = $region17
  $region16: #{tpu_custom_call.1} parent=0 // pred_region
    _
  $region17: #{tpu_custom_call.1} parent=0 // pred_fallthru
    _
  // Predicated region
  $region18: #{tpu_custom_call.1} parent=0 // pred_check
    _
  $region19: #{tpu_custom_call.1} parent=0 // pred_check_branch
    %21 = sbr.rel (0) target = $region21
  $region20: #{tpu_custom_call.1} parent=0 // pred_region
    _
  $region21: #{tpu_custom_call.1} parent=0 // pred_fallthru
    _
  // Predicated region
  $region22: #{tpu_custom_call.1} parent=0 // pred_check
    _
  $region23: #{tpu_custom_call.1} parent=0 // pred_check_branch
    %23 = sbr.rel (0) target = $region25
  $region24: #{tpu_custom_call.1} parent=0 // pred_region
    _
  $region25: #{tpu_custom_call.1} parent=0 // pred_fallthru
    _
  // Predicated region
  $region26: #{tpu_custom_call.1} parent=0 // pred_check
    _
  $region27: #{tpu_custom_call.1} parent=0 // pred_check_branch
    %25 = sbr.rel (0) target = $region29
  $region28: #{tpu_custom_call.1} parent=0 // pred_region
    _
  $region29: #{tpu_custom_call.1} parent=0 // pred_fallthru
    _
  %v27 = vld [vmem:[%s0] sm:$0xff]
  %v28 = vld [vmem:[%s0 + $0x8] sm:$0xff]
  %v29 = vld [vmem:[%s1] sm:$0xf]
  %v30 = vld [vmem:[%s1 + $0x4] sm:$0xf]
  %v31 = vld [vmem:[%s1 + $0x8] sm:$0xf]
  %v32 = vld [vmem:[%s1 + $0xc] sm:$0xf]
  %v33 = vpack.c.bf16 %v28, %v27
  %v34 = vld [vmem:[%s2] sm:$0xff]
  %v35 = vld [vmem:[%s2 + $0x8] sm:$0xff]
  %v36 = vld [vmem:[%s2 + $0x10] sm:$0xff]
  %v37 = vld [vmem:[%s2 + $0x18] sm:$0xff]
  %39 = vset.pattern.permute.xlu0 0
  %40 = vperm.xlu0 %39, %v34
  %v41 = vpop.permute.xlu0 %40
  %44 = vset.pattern.permute.xlu0 0
  %45 = vperm.xlu0 %44, %v35
  %v46 = vpop.permute.xlu0 %45
  %49 = vset.pattern.permute.xlu0 0
  %50 = vperm.xlu0 %49, %v36
  %v51 = vpop.permute.xlu0 %50
  %54 = vset.pattern.permute.xlu0 0
  %55 = vperm.xlu0 %54, %v37
  %v56 = vpop.permute.xlu0 %55
  %v62 = vunpack.c.l.b16 %v29
  %v63 = vunpack.c.l.b16 %v30
  %v64 = vunpack.c.l.b16 %v31
  %v65 = vunpack.c.l.b16 %v32
  %v66 = vpack.c.b16 %v63, %v62
  %v67 = vpack.c.b16 %v65, %v64
  %vm68 = vcmask 130048
  %v70 = vsel %vm68, %v66, 0
  %v73 = vsel %vm68, %v67, 0
  %75 = vmatprep.subr.bf16.mxu0 0
  %76 = vmatpush1.bf16.msra.mxu0 %v33
  %77 = vmatprep.subr.bf16.mxu0 0
  %78 = vmatpush1.bf16.msra.mxu0 0
  %79 = vmatprep.subr.bf16.mxu0 0
  %80 = vmatpush1.bf16.msra.mxu0 0
  %81 = vmatprep.subr.bf16.mxu0 0
  %82 = vmatpush1.bf16.msra.mxu0 0
  %83 = vmatprep.subr.bf16.mxu0 0
  %84 = vmatpush1.bf16.msra.mxu0 0
  %85 = vmatprep.subr.bf16.mxu0 0
  %86 = vmatpush1.bf16.msra.mxu0 0
  %87 = vmatprep.subr.bf16.mxu0 0
  %88 = vmatpush1.bf16.msra.mxu0 0
  %89 = vmatprep.subr.bf16.mxu0 0
  %90 = vmatpush1.bf16.msra.mxu0 0
  %91 = vmatprep.subr.bf16.mxu0 0
  %92 = vmatpush1.bf16.msra.mxu0 0
  %93 = vmatprep.subr.bf16.mxu0 0
  %94 = vmatpush1.bf16.msra.mxu0 0
  %95 = vmatprep.subr.bf16.mxu0 0
  %96 = vmatpush1.bf16.msra.mxu0 0
  %97 = vmatprep.subr.bf16.mxu0 0
  %98 = vmatpush1.bf16.msra.mxu0 0
  %99 = vmatprep.subr.bf16.mxu0 0
  %100 = vmatpush1.bf16.msra.mxu0 0
  %101 = vmatprep.subr.bf16.mxu0 0
  %102 = vmatpush1.bf16.msra.mxu0 0
  %103 = vmatprep.subr.bf16.mxu0 0
  %104 = vmatpush1.bf16.msra.mxu0 0
  %105 = vmatprep.subr.bf16.mxu0 0
  %106 = vmatpush1.bf16.msra.mxu0 0
  %107 = vmatprep.mubr.bf16.mxu0 0
  %108 = vmatmul.mubr.bf16.gmra.mrb[0].mxu0 %v70
  %v109 = vpop.f32.mrb[0].mxu0
  %v110 = vadd.f32 %v41, %v109
  %v111 = vpop.f32.mrb[0].mxu0
  %v112 = vpop.f32.mrb[0].mxu0
  %v113 = vadd.f32 %v46, %v112
  %v114 = vpop.f32.mrb[0].mxu0
  %115 = vmatprep.mubr.bf16.mxu0 0
  %116 = vmatmul.mubr.bf16.gmra.mrb[0].mxu0 %v73
  %v117 = vpop.f32.mrb[0].mxu0
  %v118 = vadd.f32 %v51, %v117
  %v119 = vpop.f32.mrb[0].mxu0
  %v120 = vpop.f32.mrb[0].mxu0
  %v121 = vadd.f32 %v56, %v120
  %v122 = vpop.f32.mrb[0].mxu0
  %123 = vdwg.mxu0
  %v124 = vtanh.pop %v110
  %v125 = vtanh.pop %v113
  %v126 = vtanh.pop %v118
  %v127 = vtanh.pop %v121
  %v128 = vld [vmem:[%s3] sm:$0xf]
  %v129 = vld [vmem:[%s3 + $0x4] sm:$0xf]
  %v130 = vld [vmem:[%s3 + $0x8] sm:$0xf]
  %v131 = vld [vmem:[%s3 + $0xc] sm:$0xf]
  %v132 = vpack.c.bf16 %v125, %v124
  %v133 = vpack.c.bf16 %v127, %v126
  %v134 = vld [vmem:[%s4] sm:$0xff]
  %v135 = vld [vmem:[%s4 + $0x8] sm:$0xff]
  %v136 = vld [vmem:[%s4 + $0x10] sm:$0xff]
  %v137 = vld [vmem:[%s4 + $0x18] sm:$0xff]
  %139 = vset.pattern.permute.xlu0 0
  %140 = vperm.xlu0 %139, %v134
  %v141 = vpop.permute.xlu0 %140
  %144 = vset.pattern.permute.xlu0 0
  %145 = vperm.xlu0 %144, %v135
  %v146 = vpop.permute.xlu0 %145
  %149 = vset.pattern.permute.xlu0 0
  %150 = vperm.xlu0 %149, %v136
  %v151 = vpop.permute.xlu0 %150
  %154 = vset.pattern.permute.xlu0 0
  %155 = vperm.xlu0 %154, %v137
  %v156 = vpop.permute.xlu0 %155
  %v162 = vunpack.c.l.b16 %v128
  %v163 = vunpack.c.l.b16 %v129
  %v164 = vunpack.c.l.b16 %v130
  %v165 = vunpack.c.l.b16 %v131
  %v166 = vpack.c.b16 %v163, %v162
  %v167 = vpack.c.b16 %v165, %v164
  %vm168 = vcmask 261120
  %v170 = vsel %vm168, %v166, 0
  %v173 = vsel %vm168, %v167, 0
  %175 = vmatprep.subr.bf16.mxu0 0
  %176 = vmatpush1.bf16.msra.mxu0 %v132
  %177 = vmatprep.subr.bf16.mxu0 0
  %178 = vmatpush1.bf16.msra.mxu0 %v133
  %179 = vmatprep.subr.bf16.mxu0 0
  %180 = vmatpush1.bf16.msra.mxu0 0
  %181 = vmatprep.subr.bf16.mxu0 0
  %182 = vmatpush1.bf16.msra.mxu0 0
  %183 = vmatprep.subr.bf16.mxu0 0
  %184 = vmatpush1.bf16.msra.mxu0 0
  %185 = vmatprep.subr.bf16.mxu0 0
  %186 = vmatpush1.bf16.msra.mxu0 0
  %187 = vmatprep.subr.bf16.mxu0 0
  %188 = vmatpush1.bf16.msra.mxu0 0
  %189 = vmatprep.subr.bf16.mxu0 0
  %190 = vmatpush1.bf16.msra.mxu0 0
  %191 = vmatprep.subr.bf16.mxu0 0
  %192 = vmatpush1.bf16.msra.mxu0 0
  %193 = vmatprep.subr.bf16.mxu0 0
  %194 = vmatpush1.bf16.msra.mxu0 0
  %195 = vmatprep.subr.bf16.mxu0 0
  %196 = vmatpush1.bf16.msra.mxu0 0
  %197 = vmatprep.subr.bf16.mxu0 0
  %198 = vmatpush1.bf16.msra.mxu0 0
  %199 = vmatprep.subr.bf16.mxu0 0
  %200 = vmatpush1.bf16.msra.mxu0 0
  %201 = vmatprep.subr.bf16.mxu0 0
  %202 = vmatpush1.bf16.msra.mxu0 0
  %203 = vmatprep.subr.bf16.mxu0 0
  %204 = vmatpush1.bf16.msra.mxu0 0
  %205 = vmatprep.subr.bf16.mxu0 0
  %206 = vmatpush1.bf16.msra.mxu0 0
  %207 = vmatprep.mubr.bf16.mxu0 0
  %208 = vmatmul.mubr.bf16.gmra.mrb[0].mxu0 %v170
  %v209 = vpop.f32.mrb[0].mxu0
  %v210 = vadd.f32 %v141, %v209
  %v211 = vpop.f32.mrb[0].mxu0
  %v212 = vpop.f32.mrb[0].mxu0
  %v213 = vadd.f32 %v146, %v212
  %v214 = vpop.f32.mrb[0].mxu0
  %215 = vmatprep.mubr.bf16.mxu0 0
  %216 = vmatmul.mubr.bf16.gmra.mrb[0].mxu0 %v173
  %v217 = vpop.f32.mrb[0].mxu0
  %v218 = vadd.f32 %v151, %v217
  %v219 = vpop.f32.mrb[0].mxu0
  %v220 = vpop.f32.mrb[0].mxu0
  %v221 = vadd.f32 %v156, %v220
  %v222 = vpop.f32.mrb[0].mxu0
  %223 = vdwg.mxu0
  %v224 = vtanh.pop %v210
  %v225 = vtanh.pop %v213
  %v226 = vtanh.pop %v218
  %v227 = vtanh.pop %v221
  %v228 = vld [vmem:[%s5] sm:$0xf]
  %v229 = vpack.c.bf16 %v225, %v224
  %v230 = vpack.c.bf16 %v227, %v226
  %v231 = vld [vmem:[%s6] sm:$0xff]
  %233 = vset.pattern.permute.xlu0 0
  %234 = vperm.xlu0 %233, %v231
  %v235 = vpop.permute.xlu0 %234
  %v238 = vsel %vm168, %v228, 0
  %240 = vmatprep.subr.bf16.mxu0 0
  %241 = vmatpush1.bf16.msra.mxu0 %v229
  %242 = vmatprep.subr.bf16.mxu0 0
  %243 = vmatpush1.bf16.msra.mxu0 %v230
  %244 = vmatprep.subr.bf16.mxu0 0
  %245 = vmatpush1.bf16.msra.mxu0 0
  %246 = vmatprep.subr.bf16.mxu0 0
  %247 = vmatpush1.bf16.msra.mxu0 0
  %248 = vmatprep.subr.bf16.mxu0 0
  %249 = vmatpush1.bf16.msra.mxu0 0
  %250 = vmatprep.subr.bf16.mxu0 0
  %251 = vmatpush1.bf16.msra.mxu0 0
  %252 = vmatprep.subr.bf16.mxu0 0
  %253 = vmatpush1.bf16.msra.mxu0 0
  %254 = vmatprep.subr.bf16.mxu0 0
  %255 = vmatpush1.bf16.msra.mxu0 0
  %256 = vmatprep.subr.bf16.mxu0 0
  %257 = vmatpush1.bf16.msra.mxu0 0
  %258 = vmatprep.subr.bf16.mxu0 0
  %259 = vmatpush1.bf16.msra.mxu0 0
  %260 = vmatprep.subr.bf16.mxu0 0
  %261 = vmatpush1.bf16.msra.mxu0 0
  %262 = vmatprep.subr.bf16.mxu0 0
  %263 = vmatpush1.bf16.msra.mxu0 0
  %264 = vmatprep.subr.bf16.mxu0 0
  %265 = vmatpush1.bf16.msra.mxu0 0
  %266 = vmatprep.subr.bf16.mxu0 0
  %267 = vmatpush1.bf16.msra.mxu0 0
  %268 = vmatprep.subr.bf16.mxu0 0
  %269 = vmatpush1.bf16.msra.mxu0 0
  %270 = vmatprep.subr.bf16.mxu0 0
  %271 = vmatpush1.bf16.msra.mxu0 0
  %272 = vmatprep.mubr.bf16.mxu0 0
  %273 = vmatmul.mubr.bf16.gmra.mrb[0].mxu0 %v238
  %v274 = vpop.f32.mrb[0].mxu0
  %v275 = vadd.f32 %v235, %v274
  %v276 = vpop.f32.mrb[0].mxu0
  %v277 = vpop.f32.mrb[0].mxu0
  %v278 = vpop.f32.mrb[0].mxu0
  %279 = vdwg.mxu0
  %vm280 = vcmask 15360
  %281 = vst.msk [vmem:[%s7] sm:$0xff] %vm280, %v275
  // Predicated region
  $region30: #{tpu_custom_call.1} parent=0 // pred_check
    _
  $region31: #{tpu_custom_call.1} parent=0 // pred_check_branch
    %283 = sbr.rel (0) target = $region33
  $region32: #{tpu_custom_call.1} parent=0 // pred_region
    _
  $region33: #{tpu_custom_call.1} parent=0 // pred_fallthru
    _
  // Predicated region
  $region34: #{tpu_custom_call.1} parent=0 // pred_check
    _
  $region35: #{tpu_custom_call.1} parent=0 // pred_check_branch
    %285 = sbr.rel (0) target = $region37
  $region36: #{tpu_custom_call.1} parent=0 // pred_region
    _
  $region37: #{tpu_custom_call.1} parent=0 // pred_fallthru
    _

</llo_original>
